<compile_context>
chip_gen: v7x
topology: tpu7x:2x2x1
jax: 0.10.0
libtpu: 0.0.40
codegen_flags: <defaults>
</compile_context>

<pallas_src>
import math

import jax
import jax.numpy as jnp
from jax.experimental import pallas as pl
from jax.experimental.pallas import tpu as pltpu


def _round_up(a: int, b: int) -> int:
    return ((a + b - 1) // b) * b


def _sublane_multiple(dtype) -> int:
    # Packed dtypes tile as (16,128) / (32,128); f32 as (8,128).
    return {1: 32, 2: 16, 4: 8}.get(jnp.dtype(dtype).itemsize, 8)


def _block_bytes_for_backend() -> int:
    # v5e (and older gens) have a 16 MiB scoped-VMEM default: keep 2 MiB blocks
    # (in+out, double-buffered -> 8 MiB resident).  v6e/v7x default to 32 MiB:
    # 4 MiB blocks (16 MiB resident) stay well inside and already sit at the
    # HBM roofline for an elementwise op.
    try:
        kind = jax.devices()[0].device_kind.lower()
    except Exception:
        kind = ""
    if any(tag in kind for tag in ("v2", "v3", "v4", "v5")):
        return 2 << 20
    return 4 << 20


def _relu_max_kernel(inv_denom_ref, x_ref, o_ref):
    # inv_denom_ref: (1,) f32 scalar in SMEM; x_ref/o_ref: (block_rows, lanes).
    scale = inv_denom_ref[0]
    x = x_ref[...]
    if x_ref.dtype == jnp.dtype(jnp.float32):
        o_ref[...] = jnp.maximum(x, 0.0) * scale
    elif x_ref.dtype in (jnp.dtype(jnp.bfloat16), jnp.dtype(jnp.float16)):
        # Native 16-bit VPU math (v6e/v7x): no upcast, halves vreg traffic.
        o_ref[...] = jnp.maximum(x, 0) * scale.astype(x_ref.dtype)
    else:
        o_ref[...] = (jnp.maximum(x.astype(jnp.float32), 0.0) * scale).astype(o_ref.dtype)


def relu_max_paper(x, gamma, seq_len=0, *, min_pallas_bytes: int = 256 * 1024):
    """Pallas implementation of ReLUMaxPaper.forward.

    x:        attention-score tensor (any shape; the op is elementwise).
    gamma:    scalar (learnable nn.Parameter in the PyTorch module).
    seq_len:  module-state counter.  Traced (int or jnp scalar) so the
              per-forward increment does NOT force a jit recompile.
    min_pallas_bytes: below this size the fused jnp expression is used
              (launch overhead dominates for tiny tensors).  Static under jit.
    """
    orig_shape = x.shape
    n = int(math.prod(orig_shape)) if orig_shape else 1
    itemsize = jnp.dtype(x.dtype).itemsize

    # denom = gamma * sqrt(max(seq_len, 1) / 2) + 1e-6   (all traced)
    L = jnp.maximum(jnp.asarray(seq_len, dtype=jnp.float32), 1.0)
    denom = jnp.asarray(gamma, dtype=jnp.float32) * jnp.sqrt(L * 0.5) + 1e-6
    inv_denom = (1.0 / denom).reshape(1)

    # Fallback path: element count not a multiple of 128 (would need an extra
    # pad/slice HBM pass to form a lane-dense slab) or tiny input.  The fused
    # jnp expression is a single elementwise pass -- already roofline-optimal.
    lanes = next((l for l in (512, 256, 128) if n % l == 0), None)
    if lanes is None or n * itemsize < min_pallas_bytes:
        return (jnp.maximum(x.astype(jnp.float32), 0.0) * inv_denom[0]).astype(x.dtype)

    rows = n // lanes
    x2 = x.reshape(rows, lanes)            # layout-only reshape, no pad / copy

    sub = _sublane_multiple(x.dtype)
    block_bytes = _block_bytes_for_backend()
    max_rows = max(sub, (block_bytes // (lanes * itemsize)) // sub * sub)
    if rows <= sub:
        block_rows = rows                  # single block == full array dim
    else:
        # Aim for >= 2 grid steps so v7x shards the stream across both TCs,
        # capped at the generation-gated block size.
        half_rows = _round_up(-(-rows // 2), sub)
        block_rows = min(max_rows, half_rows)
    grid = (pl.cdiv(rows, block_rows),)    # partial last block is masked by Pallas

    out2 = pl.pallas_call(
        _relu_max_kernel,
        out_shape=jax.ShapeDtypeStruct((rows, lanes), x.dtype),
        grid=grid,
        in_specs=[
            pl.BlockSpec(memory_space=pltpu.MemorySpace.SMEM),       # inv_denom
            pl.BlockSpec((block_rows, lanes), lambda i: (i, 0)),     # x slab
        ],
        out_specs=pl.BlockSpec((block_rows, lanes), lambda i: (i, 0)),
        compiler_params=pltpu.CompilerParams(
            dimension_semantics=("parallel",)),
        cost_estimate=pl.CostEstimate(
            flops=n, transcendentals=0, bytes_accessed=2 * n * itemsize),
    )(inv_denom, x2)

    return out2.reshape(orig_shape)


def relu_max_paper_ref(x, gamma, seq_len: int = 0):
    L = max(int(seq_len), 1)
    denom = jnp.asarray(gamma, dtype=jnp.float32) * math.sqrt(L / 2.0) + 1e-6
    return (jnp.maximum(x.astype(jnp.float32), 0.0) / denom).astype(x.dtype)


if __name__ == "__main__":
    key = jax.random.PRNGKey(0)
    gamma = jnp.float32(1.0)                     # nn.Parameter(torch.tensor(1.0))

    fn = jax.jit(relu_max_paper, static_argnames=("min_pallas_bytes",))

    # (1) module-implied small attention-score shape, forced through the Pallas
    #     path; (2) larger slab that exercises the multi-block (>=2-step) grid.
    x_small = jax.random.normal(key, (2, 4, 16, 16), dtype=jnp.float32)
    x_big = jax.random.normal(jax.random.PRNGKey(1), (2, 8, 64, 128), dtype=jnp.float32)

    ok = True
    for x, kw in ((x_small, dict(min_pallas_bytes=0)), (x_big, {})):
        for seq_len in (0, 7):                   # traced counter: no recompile per step
            out = jax.block_until_ready(fn(x, gamma, jnp.int32(seq_len), **kw))
            ref = relu_max_paper_ref(x, gamma, seq_len)
            assert out.shape == x.shape and out.dtype == x.dtype
            ok &= bool(jnp.allclose(out, ref, atol=1e-6, rtol=1e-5))

    assert ok, "mismatch vs reference"
    print("KERNEL_OK")
</pallas_src>

<mosaic_0001>
module attributes {stable_mosaic.version = 11 : i64} {
  func.func @_relu_max_kernel(%arg0: i32, %arg1: memref<1xf32, #tpu.memory_space<smem>>, %arg2: memref<4x512xf32, #tpu.memory_space<vmem>>, %arg3: memref<4x512xf32, #tpu.memory_space<vmem>>) attributes {dimension_semantics = [#tpu.dimension_semantics<parallel>], iteration_bounds = array<i64: 1>, scalar_prefetch = 0 : i64, scratch_operands = 0 : i64, tpu.core_type = #tpu.core_type<tc>, window_params = [{transform_indices = @transform_0, window_bounds = array<i64: 1>}, {transform_indices = @transform_1, window_bounds = array<i64: 4, 512>}, {transform_indices = @transform_2, window_bounds = array<i64: 4, 512>}]} {
    %c0 = arith.constant 0 : index
    %0 = memref.load %arg1[%c0] : memref<1xf32, #tpu.memory_space<smem>>
    %c0_0 = arith.constant 0 : index
    %c0_1 = arith.constant 0 : index
    %1 = vector.load %arg2[%c0_0, %c0_1] : memref<4x512xf32, #tpu.memory_space<vmem>>, vector<4x512xf32>
    %cst = arith.constant 0.000000e+00 : f32
    %2 = vector.broadcast %cst : f32 to vector<4x512xf32>
    %3 = arith.maximumf %1, %2 : vector<4x512xf32>
    %4 = vector.broadcast %0 : f32 to vector<4x512xf32>
    %5 = arith.mulf %3, %4 : vector<4x512xf32>
    %c0_2 = arith.constant 0 : index
    %c0_3 = arith.constant 0 : index
    %6 = vector.load %arg3[%c0_2, %c0_3] : memref<4x512xf32, #tpu.memory_space<vmem>>, vector<4x512xf32>
    tpu.vector_store %arg3[%c0_2, %c0_3], %5 {strides = array<i32>} : memref<4x512xf32, #tpu.memory_space<vmem>>, vector<4x512xf32>,
    return
  }
  func.func @transform_0(%arg0: i32) -> i32 {
    %c0_i32 = arith.constant 0 : i32
    %c0_i32_0 = arith.constant 0 : i32
    return %c0_i32 : i32
  }
  func.func @transform_1(%arg0: i32) -> (i32, i32) {
    %c0_i32 = arith.constant 0 : i32
    %c0_i32_0 = arith.constant 0 : i32
    return %arg0, %c0_i32 : i32, i32
  }
  func.func @transform_2(%arg0: i32) -> (i32, i32) {
    %c0_i32 = arith.constant 0 : i32
    %c0_i32_0 = arith.constant 0 : i32
    return %arg0, %c0_i32 : i32, i32
  }
}

</mosaic_0001>

<llo_original>
// kernel: relu_max_paper.1
$region0: #{relu_max_paper.1}
  #allocation0 [shape = 'u32[]', space=smem, size = 0x4, offset = 0x4, fixed_abs, tag = 'smem constant byte address 0x4 - core index']
  #allocation1 [shape = 'u32[144,128]{1,0:T(1,128)}', space=vmem, size = 0x12000, scoped, tag = 'internal scratch']
  #allocation2 [shape = 'f32[1]{0:T(128)S(6)}', space=smem, size = 0x200, scoped, tag = 'scoped memory for relu_max_paper.1']
  %s0 = inlined_call_operand.<no memory space> [shape: f32[1], index: 0, kind: input, shape index: {}]
  %s1 = inlined_call_operand.vmem [shape: f32[4,512], index: 1, kind: input, shape index: {}]
  %s2 = inlined_call_operand.vmem [shape: f32[4,512], index: 2, kind: output, shape index: {}]
  %s3 = sld [smem:[#allocation0]]
  $region18: #{relu_max_paper.1} parent=0
    _
  %s5 = ssub.s32 1, %s3
  %s6 = scalar_select 0, %s5, %s3
  %7 = sst [smem:[#allocation2]] %s0
  // Predicated region
  $region2: #{relu_max_paper.1} parent=0 // pred_check
    _
  $region3: #{relu_max_paper.1} parent=0 // pred_check_branch
    %9 = sbr.rel (0) target = $region5
  $region4: #{relu_max_paper.1} parent=0 // pred_region
    _
  $region5: #{relu_max_paper.1} parent=0 // pred_fallthru
    _
  // Predicated region
  $region6: #{relu_max_paper.1} parent=0 // pred_check
    _
  $region7: #{relu_max_paper.1} parent=0 // pred_check_branch
    %11 = sbr.rel (0) target = $region9
  $region8: #{relu_max_paper.1} parent=0 // pred_region
    _
  $region9: #{relu_max_paper.1} parent=0 // pred_fallthru
    _
  %s12 = sld [smem:[#allocation2]]
  %v13 = vld [vmem:[%s1] sm:$0xff]
  %v14 = vld [vmem:[%s1 + $0x8] sm:$0xff]
  %v15 = vmax.f32 %v13, 0.0
  %v16 = vmax.f32 %v14, 0.0
  %v17 = vstv %s12
  %v18 = vmul.f32 %v15, %v17
  %v19 = vmul.f32 %v16, %v17
  %20 = vst [vmem:[%s2] sm:$0xff] %v18
  %21 = vst [vmem:[%s2 + $0x8] sm:$0xff] %v19
  // Predicated region
  $region10: #{relu_max_paper.1} parent=0 // pred_check
    _
  $region11: #{relu_max_paper.1} parent=0 // pred_check_branch
    %23 = sbr.rel (0) target = $region13
  $region12: #{relu_max_paper.1} parent=0 // pred_region
    _
  $region13: #{relu_max_paper.1} parent=0 // pred_fallthru
    _
  // Predicated region
  $region14: #{relu_max_paper.1} parent=0 // pred_check
    _
  $region15: #{relu_max_paper.1} parent=0 // pred_check_branch
    %25 = sbr.rel (0) target = $region17
  $region16: #{relu_max_paper.1} parent=0 // pred_region
    _
  $region17: #{relu_max_paper.1} parent=0 // pred_fallthru
    _

</llo_original>
